<compile_context>
chip_gen: v7x
topology: tpu7x:2x2x1
jax: 0.10.0
libtpu: 0.0.40
codegen_flags: <defaults>
</compile_context>

<pallas_src>
import functools

import jax
import jax.numpy as jnp
from jax.experimental import pallas as pl
from jax.experimental.pallas import tpu as pltpu

# Hyperparameters (module-level constants in the original code).
HIDDEN_SIZE1 = 128
HIDDEN_SIZE2 = 128
HIDDEN_SIZE3 = 64
LN_EPS = 1e-5

_OUT_LANES = 128        # lane-dense padded output width
_SMALL_BATCH = 256      # <= this -> single fused block, no grid
_TILE_B = 512           # batch tile for the gridded path (mult. of 8, MXU-friendly)


def _layer_norm(h, gamma, beta):
    # Variance via E[h^2] - mean^2: the two reductions are independent and can
    # overlap in the XLU slot.
    mean = jnp.mean(h, axis=-1, keepdims=True)
    mean_sq = jnp.mean(h * h, axis=-1, keepdims=True)
    var = jnp.maximum(mean_sq - mean * mean, 0.0)
    return (h - mean) * jax.lax.rsqrt(var + LN_EPS) * gamma + beta


def _dqn_kernel(x_ref,
                w1_ref, b1_ref, g1_ref, be1_ref,
                w2_ref, b2_ref, g2_ref, be2_ref,
                w3_ref, b3_ref,
                w4_ref, b4_ref,
                o_ref):
    # ----- Linear 1 + LayerNorm + ReLU (+ Dropout identity at inference) -----
    x = x_ref[...].astype(jnp.bfloat16)
    h = jnp.dot(x, w1_ref[...], preferred_element_type=jnp.float32) + b1_ref[...]
    h = _layer_norm(h, g1_ref[...], be1_ref[...])
    h = jnp.maximum(h, 0.0)
    # TODO(synk): Dropout(0.1) is identity (eval mode); a training-mode mask
    # would use pltpu.prng_seed / pltpu.prng_random_bits.

    # ----- Linear 2 + LayerNorm + ReLU -----
    h = jnp.dot(h.astype(jnp.bfloat16), w2_ref[...],
                preferred_element_type=jnp.float32) + b2_ref[...]
    h = _layer_norm(h, g2_ref[...], be2_ref[...])
    h = jnp.maximum(h, 0.0)

    # ----- Linear 3 + ReLU -----
    h = jnp.dot(h.astype(jnp.bfloat16), w3_ref[...],
                preferred_element_type=jnp.float32) + b3_ref[...]
    h = jnp.maximum(h, 0.0)

    # ----- Linear 4 (output head, lane-dense padded to 128 columns) -----
    o_ref[...] = (jnp.dot(h.astype(jnp.bfloat16), w4_ref[...],
                          preferred_element_type=jnp.float32)
                  + b4_ref[...]).astype(o_ref.dtype)


def _xavier_uniform(key, fan_in, fan_out):
    limit = (6.0 / (fan_in + fan_out)) ** 0.5
    # Stored [in, out] (transposed vs. PyTorch's [out, in]).
    return jax.random.uniform(key, (fan_in, fan_out), jnp.float32,
                              minval=-limit, maxval=limit)


def init_dqn_params(key, state_size, action_size):
    ks = jax.random.split(key, 4)
    out_pad = max(_OUT_LANES, ((action_size + 127) // 128) * 128)
    w4 = _xavier_uniform(ks[3], HIDDEN_SIZE3, action_size)
    w4 = jnp.pad(w4, ((0, 0), (0, out_pad - action_size)))   # lane-dense pad
    params = {
        "w1": _xavier_uniform(ks[0], state_size, HIDDEN_SIZE1).astype(jnp.bfloat16),
        "b1": jnp.zeros((1, HIDDEN_SIZE1), jnp.float32),
        "g1": jnp.ones((1, HIDDEN_SIZE1), jnp.float32),
        "be1": jnp.zeros((1, HIDDEN_SIZE1), jnp.float32),
        "w2": _xavier_uniform(ks[1], HIDDEN_SIZE1, HIDDEN_SIZE2).astype(jnp.bfloat16),
        "b2": jnp.zeros((1, HIDDEN_SIZE2), jnp.float32),
        "g2": jnp.ones((1, HIDDEN_SIZE2), jnp.float32),
        "be2": jnp.zeros((1, HIDDEN_SIZE2), jnp.float32),
        "w3": _xavier_uniform(ks[2], HIDDEN_SIZE2, HIDDEN_SIZE3).astype(jnp.bfloat16),
        "b3": jnp.zeros((1, HIDDEN_SIZE3), jnp.float32),
        "w4": w4.astype(jnp.bfloat16),
        "b4": jnp.zeros((1, out_pad), jnp.float32),
    }
    return params


@functools.partial(jax.jit, static_argnames=("action_size",))
def dqn_forward(x, params, *, action_size):
    # Mirror `if x.ndim == 1: x = x.unsqueeze(0)`
    if x.ndim == 1:
        x = x[None, :]
    B, state_size = x.shape
    out_pad = params["w4"].shape[1]

    param_args = (params["w1"], params["b1"], params["g1"], params["be1"],
                  params["w2"], params["b2"], params["g2"], params["be2"],
                  params["w3"], params["b3"],
                  params["w4"], params["b4"])

    if B <= _SMALL_BATCH:
        # Latency path: single fused block, no grid overhead.
        vmem = pl.BlockSpec(memory_space=pltpu.MemorySpace.VMEM)
        out = pl.pallas_call(
            _dqn_kernel,
            out_shape=jax.ShapeDtypeStruct((B, out_pad), jnp.float32),
            in_specs=[vmem] * (1 + len(param_args)),
            out_specs=vmem,
        )(x, *param_args)
    else:
        # Throughput path: batch-tiled, pipelined, megacore-parallel grid.
        tile_b = _TILE_B
        num_tiles = pl.cdiv(B, tile_b)
        b_padded = num_tiles * tile_b
        xp = jnp.pad(x, ((0, b_padded - B), (0, 0))) if b_padded != B else x

        in_specs = [pl.BlockSpec((tile_b, state_size), lambda i: (i, 0))]
        # Params: full-shape blocks, same block every step -> DMA'd once, VMEM-resident.
        in_specs += [pl.BlockSpec(p.shape, lambda i: (0, 0)) for p in param_args]

        out = pl.pallas_call(
            _dqn_kernel,
            grid=(num_tiles,),
            out_shape=jax.ShapeDtypeStruct((b_padded, out_pad), jnp.float32),
            in_specs=in_specs,
            out_specs=pl.BlockSpec((tile_b, out_pad), lambda i: (i, 0)),
            compiler_params=pltpu.CompilerParams(
                dimension_semantics=("parallel",)),
        )(xp, *param_args)
        out = out[:B]

    return out[:, :action_size]


def _reference_forward(x, params, action_size):
    # Mirrors kernel dtype scheme (bf16 matmul operands, f32 accumulation / LN).
    if x.ndim == 1:
        x = x[None, :]

    def ln(h, g, b):
        m = h.mean(-1, keepdims=True)
        v = h.var(-1, keepdims=True)
        return (h - m) * jax.lax.rsqrt(v + LN_EPS) * g + b

    h = jnp.dot(x.astype(jnp.bfloat16), params["w1"],
                preferred_element_type=jnp.float32) + params["b1"]
    h = jnp.maximum(ln(h, params["g1"], params["be1"]), 0.0)
    h = jnp.dot(h.astype(jnp.bfloat16), params["w2"],
                preferred_element_type=jnp.float32) + params["b2"]
    h = jnp.maximum(ln(h, params["g2"], params["be2"]), 0.0)
    h = jnp.maximum(jnp.dot(h.astype(jnp.bfloat16), params["w3"],
                            preferred_element_type=jnp.float32) + params["b3"], 0.0)
    out = jnp.dot(h.astype(jnp.bfloat16), params["w4"],
                  preferred_element_type=jnp.float32) + params["b4"]
    return out[:, :action_size]


if __name__ == "__main__":
    state_size = 16
    action_size = 8

    key = jax.random.PRNGKey(0)
    pkey, xkey1, xkey2 = jax.random.split(key, 3)
    params = init_dqn_params(pkey, state_size, action_size)

    # Small-batch (latency) path.
    x_small = jax.random.normal(xkey1, (2, state_size), jnp.float32)
    out_small = jax.block_until_ready(dqn_forward(x_small, params,
                                                  action_size=action_size))
    ref_small = _reference_forward(x_small, params, action_size)
    assert out_small.shape == (2, action_size)
    assert jnp.allclose(out_small, ref_small, atol=2e-3, rtol=2e-3), \
        "small-batch mismatch vs reference"

    # Gridded (replay-batch) path, with a non-multiple-of-TILE_B batch.
    x_big = jax.random.normal(xkey2, (1000, state_size), jnp.float32)
    out_big = jax.block_until_ready(dqn_forward(x_big, params,
                                                action_size=action_size))
    ref_big = _reference_forward(x_big, params, action_size)
    assert out_big.shape == (1000, action_size)
    assert jnp.allclose(out_big, ref_big, atol=2e-3, rtol=2e-3), \
        "gridded-batch mismatch vs reference"

    print("KERNEL_OK")
</pallas_src>

<mosaic_0001>
module attributes {stable_mosaic.version = 11 : i64} {
  func.func @_dqn_kernel(%arg0: memref<2x16xf32, #tpu.memory_space<vmem>>, %arg1: memref<16x128xbf16, #tpu.memory_space<vmem>>, %arg2: memref<1x128xf32, #tpu.memory_space<vmem>>, %arg3: memref<1x128xf32, #tpu.memory_space<vmem>>, %arg4: memref<1x128xf32, #tpu.memory_space<vmem>>, %arg5: memref<128x128xbf16, #tpu.memory_space<vmem>>, %arg6: memref<1x128xf32, #tpu.memory_space<vmem>>, %arg7: memref<1x128xf32, #tpu.memory_space<vmem>>, %arg8: memref<1x128xf32, #tpu.memory_space<vmem>>, %arg9: memref<128x64xbf16, #tpu.memory_space<vmem>>, %arg10: memref<1x64xf32, #tpu.memory_space<vmem>>, %arg11: memref<64x128xbf16, #tpu.memory_space<vmem>>, %arg12: memref<1x128xf32, #tpu.memory_space<vmem>>, %arg13: memref<2x128xf32, #tpu.memory_space<vmem>>) attributes {dimension_semantics = [], scalar_prefetch = 0 : i64, scratch_operands = 0 : i64, tpu.core_type = #tpu.core_type<tc>} {
    %c0 = arith.constant 0 : index
    %c0_0 = arith.constant 0 : index
    %0 = vector.load %arg0[%c0, %c0_0] : memref<2x16xf32, #tpu.memory_space<vmem>>, vector<2x16xf32>
    %1 = arith.truncf %0 : vector<2x16xf32> to vector<2x16xbf16>
    %c0_1 = arith.constant 0 : index
    %c0_2 = arith.constant 0 : index
    %2 = vector.load %arg1[%c0_1, %c0_2] : memref<16x128xbf16, #tpu.memory_space<vmem>>, vector<16x128xbf16>
    %cst = arith.constant dense<0.000000e+00> : vector<2x128xf32>
    %3 = tpu.matmul %1, %2, %cst {dimension_numbers = #tpu.dot_dimension_numbers<[1], [0], [0], [1], [0, 0, 1, 1], [], []>} : vector<2x16xbf16>, vector<16x128xbf16>, vector<2x128xf32> -> vector<2x128xf32>
    %c0_3 = arith.constant 0 : index
    %c0_4 = arith.constant 0 : index
    %4 = vector.load %arg2[%c0_3, %c0_4] : memref<1x128xf32, #tpu.memory_space<vmem>>, vector<1x128xf32>
    %5 = vector.broadcast %4 : vector<1x128xf32> to vector<2x128xf32>
    %6 = arith.addf %3, %5 : vector<2x128xf32>
    %c0_5 = arith.constant 0 : index
    %c0_6 = arith.constant 0 : index
    %7 = vector.load %arg3[%c0_5, %c0_6] : memref<1x128xf32, #tpu.memory_space<vmem>>, vector<1x128xf32>
    %c0_7 = arith.constant 0 : index
    %c0_8 = arith.constant 0 : index
    %8 = vector.load %arg4[%c0_7, %c0_8] : memref<1x128xf32, #tpu.memory_space<vmem>>, vector<1x128xf32>
    %cst_9 = arith.constant dense<0.000000e+00> : vector<2xf32>
    %9 = vector.multi_reduction <add>, %6, %cst_9 [1] : vector<2x128xf32> to vector<2xf32>
    %10 = vector.shape_cast %9 : vector<2xf32> to vector<2x1xf32>
    %cst_10 = arith.constant 1.280000e+02 : f32
    %11 = vector.broadcast %cst_10 : f32 to vector<2x1xf32>
    %12 = arith.divf %10, %11 : vector<2x1xf32>
    %13 = arith.mulf %6, %6 : vector<2x128xf32>
    %cst_11 = arith.constant dense<0.000000e+00> : vector<2xf32>
    %14 = vector.multi_reduction <add>, %13, %cst_11 [1] : vector<2x128xf32> to vector<2xf32>
    %15 = vector.shape_cast %14 : vector<2xf32> to vector<2x1xf32>
    %cst_12 = arith.constant 1.280000e+02 : f32
    %16 = vector.broadcast %cst_12 : f32 to vector<2x1xf32>
    %17 = arith.divf %15, %16 : vector<2x1xf32>
    %18 = arith.mulf %12, %12 : vector<2x1xf32>
    %19 = arith.subf %17, %18 : vector<2x1xf32>
    %cst_13 = arith.constant 0.000000e+00 : f32
    %20 = vector.broadcast %cst_13 : f32 to vector<2x1xf32>
    %21 = arith.maximumf %19, %20 : vector<2x1xf32>
    %22 = vector.broadcast %12 : vector<2x1xf32> to vector<2x128xf32>
    %23 = arith.subf %6, %22 : vector<2x128xf32>
    %cst_14 = arith.constant 9.99999974E-6 : f32
    %24 = vector.broadcast %cst_14 : f32 to vector<2x1xf32>
    %25 = arith.addf %21, %24 : vector<2x1xf32>
    %26 = math.rsqrt %25 : vector<2x1xf32>
    %27 = vector.broadcast %26 : vector<2x1xf32> to vector<2x128xf32>
    %28 = arith.mulf %23, %27 : vector<2x128xf32>
    %29 = vector.broadcast %7 : vector<1x128xf32> to vector<2x128xf32>
    %30 = arith.mulf %28, %29 : vector<2x128xf32>
    %31 = vector.broadcast %8 : vector<1x128xf32> to vector<2x128xf32>
    %32 = arith.addf %30, %31 : vector<2x128xf32>
    %cst_15 = arith.constant 0.000000e+00 : f32
    %33 = vector.broadcast %cst_15 : f32 to vector<2x128xf32>
    %34 = arith.maximumf %32, %33 : vector<2x128xf32>
    %35 = arith.truncf %34 : vector<2x128xf32> to vector<2x128xbf16>
    %c0_16 = arith.constant 0 : index
    %c0_17 = arith.constant 0 : index
    %36 = vector.load %arg5[%c0_16, %c0_17] : memref<128x128xbf16, #tpu.memory_space<vmem>>, vector<128x128xbf16>
    %cst_18 = arith.constant dense<0.000000e+00> : vector<2x128xf32>
    %37 = tpu.matmul %35, %36, %cst_18 {dimension_numbers = #tpu.dot_dimension_numbers<[1], [0], [0], [1], [0, 0, 1, 1], [], []>} : vector<2x128xbf16>, vector<128x128xbf16>, vector<2x128xf32> -> vector<2x128xf32>
    %c0_19 = arith.constant 0 : index
    %c0_20 = arith.constant 0 : index
    %38 = vector.load %arg6[%c0_19, %c0_20] : memref<1x128xf32, #tpu.memory_space<vmem>>, vector<1x128xf32>
    %39 = vector.broadcast %38 : vector<1x128xf32> to vector<2x128xf32>
    %40 = arith.addf %37, %39 : vector<2x128xf32>
    %c0_21 = arith.constant 0 : index
    %c0_22 = arith.constant 0 : index
    %41 = vector.load %arg7[%c0_21, %c0_22] : memref<1x128xf32, #tpu.memory_space<vmem>>, vector<1x128xf32>
    %c0_23 = arith.constant 0 : index
    %c0_24 = arith.constant 0 : index
    %42 = vector.load %arg8[%c0_23, %c0_24] : memref<1x128xf32, #tpu.memory_space<vmem>>, vector<1x128xf32>
    %cst_25 = arith.constant dense<0.000000e+00> : vector<2xf32>
    %43 = vector.multi_reduction <add>, %40, %cst_25 [1] : vector<2x128xf32> to vector<2xf32>
    %44 = vector.shape_cast %43 : vector<2xf32> to vector<2x1xf32>
    %cst_26 = arith.constant 1.280000e+02 : f32
    %45 = vector.broadcast %cst_26 : f32 to vector<2x1xf32>
    %46 = arith.divf %44, %45 : vector<2x1xf32>
    %47 = arith.mulf %40, %40 : vector<2x128xf32>
    %cst_27 = arith.constant dense<0.000000e+00> : vector<2xf32>
    %48 = vector.multi_reduction <add>, %47, %cst_27 [1] : vector<2x128xf32> to vector<2xf32>
    %49 = vector.shape_cast %48 : vector<2xf32> to vector<2x1xf32>
    %cst_28 = arith.constant 1.280000e+02 : f32
    %50 = vector.broadcast %cst_28 : f32 to vector<2x1xf32>
    %51 = arith.divf %49, %50 : vector<2x1xf32>
    %52 = arith.mulf %46, %46 : vector<2x1xf32>
    %53 = arith.subf %51, %52 : vector<2x1xf32>
    %cst_29 = arith.constant 0.000000e+00 : f32
    %54 = vector.broadcast %cst_29 : f32 to vector<2x1xf32>
    %55 = arith.maximumf %53, %54 : vector<2x1xf32>
    %56 = vector.broadcast %46 : vector<2x1xf32> to vector<2x128xf32>
    %57 = arith.subf %40, %56 : vector<2x128xf32>
    %cst_30 = arith.constant 9.99999974E-6 : f32
    %58 = vector.broadcast %cst_30 : f32 to vector<2x1xf32>
    %59 = arith.addf %55, %58 : vector<2x1xf32>
    %60 = math.rsqrt %59 : vector<2x1xf32>
    %61 = vector.broadcast %60 : vector<2x1xf32> to vector<2x128xf32>
    %62 = arith.mulf %57, %61 : vector<2x128xf32>
    %63 = vector.broadcast %41 : vector<1x128xf32> to vector<2x128xf32>
    %64 = arith.mulf %62, %63 : vector<2x128xf32>
    %65 = vector.broadcast %42 : vector<1x128xf32> to vector<2x128xf32>
    %66 = arith.addf %64, %65 : vector<2x128xf32>
    %cst_31 = arith.constant 0.000000e+00 : f32
    %67 = vector.broadcast %cst_31 : f32 to vector<2x128xf32>
    %68 = arith.maximumf %66, %67 : vector<2x128xf32>
    %69 = arith.truncf %68 : vector<2x128xf32> to vector<2x128xbf16>
    %c0_32 = arith.constant 0 : index
    %c0_33 = arith.constant 0 : index
    %70 = vector.load %arg9[%c0_32, %c0_33] : memref<128x64xbf16, #tpu.memory_space<vmem>>, vector<128x64xbf16>
    %cst_34 = arith.constant dense<0.000000e+00> : vector<2x64xf32>
    %71 = tpu.matmul %69, %70, %cst_34 {dimension_numbers = #tpu.dot_dimension_numbers<[1], [0], [0], [1], [0, 0, 1, 1], [], []>} : vector<2x128xbf16>, vector<128x64xbf16>, vector<2x64xf32> -> vector<2x64xf32>
    %c0_35 = arith.constant 0 : index
    %c0_36 = arith.constant 0 : index
    %72 = vector.load %arg10[%c0_35, %c0_36] : memref<1x64xf32, #tpu.memory_space<vmem>>, vector<1x64xf32>
    %73 = vector.broadcast %72 : vector<1x64xf32> to vector<2x64xf32>
    %74 = arith.addf %71, %73 : vector<2x64xf32>
    %cst_37 = arith.constant 0.000000e+00 : f32
    %75 = vector.broadcast %cst_37 : f32 to vector<2x64xf32>
    %76 = arith.maximumf %74, %75 : vector<2x64xf32>
    %77 = arith.truncf %76 : vector<2x64xf32> to vector<2x64xbf16>
    %c0_38 = arith.constant 0 : index
    %c0_39 = arith.constant 0 : index
    %78 = vector.load %arg11[%c0_38, %c0_39] : memref<64x128xbf16, #tpu.memory_space<vmem>>, vector<64x128xbf16>
    %cst_40 = arith.constant dense<0.000000e+00> : vector<2x128xf32>
    %79 = tpu.matmul %77, %78, %cst_40 {dimension_numbers = #tpu.dot_dimension_numbers<[1], [0], [0], [1], [0, 0, 1, 1], [], []>} : vector<2x64xbf16>, vector<64x128xbf16>, vector<2x128xf32> -> vector<2x128xf32>
    %c0_41 = arith.constant 0 : index
    %c0_42 = arith.constant 0 : index
    %80 = vector.load %arg12[%c0_41, %c0_42] : memref<1x128xf32, #tpu.memory_space<vmem>>, vector<1x128xf32>
    %81 = vector.broadcast %80 : vector<1x128xf32> to vector<2x128xf32>
    %82 = arith.addf %79, %81 : vector<2x128xf32>
    %c0_43 = arith.constant 0 : index
    %c0_44 = arith.constant 0 : index
    %83 = vector.load %arg13[%c0_43, %c0_44] : memref<2x128xf32, #tpu.memory_space<vmem>>, vector<2x128xf32>
    tpu.vector_store %arg13[%c0_43, %c0_44], %82 {strides = array<i32>} : memref<2x128xf32, #tpu.memory_space<vmem>>, vector<2x128xf32>,
    return
  }
}

</mosaic_0001>

<llo_original>
// kernel: dqn_forward.1
$region0: #{dqn_forward.1}
  #allocation0 [shape = 'u32[]', space=smem, size = 0x4, offset = 0x4, fixed_abs, tag = 'smem constant byte address 0x4 - core index']
  #allocation1 [shape = 'u32[144,128]{1,0:T(1,128)}', space=vmem, size = 0x12000, scoped, tag = 'internal scratch']
  %s0 = inlined_call_operand.hbm [shape: f32[2,16], index: 0, kind: input, shape index: {}]
  %s1 = inlined_call_operand.vmem [shape: bf16[16,128], index: 1, kind: input, shape index: {}]
  %s2 = inlined_call_operand.vmem [shape: f32[1,128], index: 2, kind: input, shape index: {}]
  %s3 = inlined_call_operand.hbm [shape: f32[1,128], index: 3, kind: input, shape index: {}]
  %s4 = inlined_call_operand.hbm [shape: f32[1,128], index: 4, kind: input, shape index: {}]
  %s5 = inlined_call_operand.vmem [shape: bf16[128,128], index: 5, kind: input, shape index: {}]
  %s6 = inlined_call_operand.hbm [shape: f32[1,128], index: 6, kind: input, shape index: {}]
  %s7 = inlined_call_operand.hbm [shape: f32[1,128], index: 7, kind: input, shape index: {}]
  %s8 = inlined_call_operand.hbm [shape: f32[1,128], index: 8, kind: input, shape index: {}]
  %s9 = inlined_call_operand.vmem [shape: bf16[128,64], index: 9, kind: input, shape index: {}]
  %s10 = inlined_call_operand.hbm [shape: f32[1,64], index: 10, kind: input, shape index: {}]
  %s11 = inlined_call_operand.vmem [shape: bf16[64,128], index: 11, kind: input, shape index: {}]
  %s12 = inlined_call_operand.hbm [shape: f32[1,128], index: 12, kind: input, shape index: {}]
  %s13 = inlined_call_operand.hbm [shape: f32[2,128], index: 13, kind: output, shape index: {}]
  %s14 = sld [smem:[#allocation0]]
  $region94: #{dqn_forward.1} parent=0
    _
  %s16 = ssub.s32 1, %s14
  %s17 = scalar_select 0, %s16, %s14
  $region1: #{dqn_forward.1} parent=0
    #allocation2 [shape = 'u8[1024]{0}', space=vmem, size = 0x400, scoped, tag = 'input window, operand 0, single buffered']
    #allocation3 [shape = 's32[1]{0}', space=sflag, size = 0x4, scoped, tag = 'scoped memory for dqn_forward.1']
    #allocation4 [shape = 's32[1]{0}', space=sflag, size = 0x4, scoped, tag = 'scoped memory for dqn_forward.1']
    #allocation5 [shape = 'u8[512]{0}', space=vmem, size = 0x400, scoped, tag = 'input window, operand 3, single buffered']
    #allocation6 [shape = 's32[1]{0}', space=sflag, size = 0x4, scoped, tag = 'scoped memory for dqn_forward.1']
    #allocation7 [shape = 'u8[512]{0}', space=vmem, size = 0x400, scoped, tag = 'input window, operand 4, single buffered']
    #allocation8 [shape = 'u8[512]{0}', space=vmem, size = 0x400, scoped, tag = 'input window, operand 6, single buffered']
    #allocation9 [shape = 's32[1]{0}', space=sflag, size = 0x4, scoped, tag = 'scoped memory for dqn_forward.1']
    #allocation10 [shape = 'u8[512]{0}', space=vmem, size = 0x400, scoped, tag = 'input window, operand 7, single buffered']
    #allocation11 [shape = 'u8[512]{0}', space=vmem, size = 0x400, scoped, tag = 'input window, operand 8, single buffered']
    #allocation12 [shape = 's32[1]{0}', space=sflag, size = 0x4, scoped, tag = 'scoped memory for dqn_forward.1']
    #allocation13 [shape = 'u8[512]{0}', space=vmem, size = 0x400, scoped, tag = 'input window, operand 10, single buffered']
    #allocation14 [shape = 'u8[512]{0}', space=vmem, size = 0x400, scoped, tag = 'input window, operand 12, single buffered']
    #allocation15 [shape = 's32[1]{0}', space=sflag, size = 0x4, scoped, tag = 'scoped memory for dqn_forward.1']
    #allocation16 [shape = 'u8[1024]{0}', space=vmem, size = 0x400, scoped, tag = 'output window, operand 0, single buffered']
    %18 = vsyncpa [#allocation3], 0
    %19 = vsyncpa [#allocation6], 0
    %20 = vsyncpa [#allocation9], 0
    %21 = vsyncpa [#allocation12], 0
    %22 = vsyncpa [#allocation15], 0
    %23 = vsyncpa [#allocation4], 0
    // Predicated region
    $region2: #{dqn_forward.1} parent=1 // pred_check
      _
    $region3: #{dqn_forward.1} parent=1 // pred_check_branch
      %25 = sbr.rel (0) target = $region5
    $region4: #{dqn_forward.1} parent=1 // pred_region
      %s27 = ssub.s32 32, 32
      %28 = vsyncadd [#allocation3], %s27
      %s30 = sshll.u32 [#allocation2], 4
      %s31 = int_to_ptr.vmem [resolvable:$true] %s30
      %33 = dma.hbm_to_vmem [thread:$0]  %s0, 32, %s31, [#allocation3]
    $region5: #{dqn_forward.1} parent=1 // pred_fallthru
      _
    // Predicated region
    $region6: #{dqn_forward.1} parent=1 // pred_check
      _
    $region7: #{dqn_forward.1} parent=1 // pred_check_branch
      %35 = sbr.rel (0) target = $region9
    $region8: #{dqn_forward.1} parent=1 // pred_region
      _
    $region9: #{dqn_forward.1} parent=1 // pred_fallthru
      _
    // Predicated region
    $region10: #{dqn_forward.1} parent=1 // pred_check
      _
    $region11: #{dqn_forward.1} parent=1 // pred_check_branch
      %37 = sbr.rel (0) target = $region13
    $region12: #{dqn_forward.1} parent=1 // pred_region
      _
    $region13: #{dqn_forward.1} parent=1 // pred_fallthru
      _
    // Predicated region
    $region14: #{dqn_forward.1} parent=1 // pred_check
      _
    $region15: #{dqn_forward.1} parent=1 // pred_check_branch
      %39 = sbr.rel (0) target = $region17
    $region16: #{dqn_forward.1} parent=1 // pred_region
      %s41 = ssub.s32 16, 16
      %42 = vsyncadd [#allocation6], %s41
      %s44 = sshll.u32 [#allocation5], 4
      %s45 = int_to_ptr.vmem [resolvable:$true] %s44
      %47 = dma.hbm_to_vmem [thread:$0]  %s3, 16, %s45, [#allocation6]
    $region17: #{dqn_forward.1} parent=1 // pred_fallthru
      _
    // Predicated region
    $region18: #{dqn_forward.1} parent=1 // pred_check
      _
    $region19: #{dqn_forward.1} parent=1 // pred_check_branch
      %49 = sbr.rel (0) target = $region21
    $region20: #{dqn_forward.1} parent=1 // pred_region
      %s51 = ssub.s32 16, 16
      %52 = vsyncadd [#allocation6], %s51
      %s54 = sshll.u32 [#allocation7], 4
      %s55 = int_to_ptr.vmem [resolvable:$true] %s54
      %57 = dma.hbm_to_vmem [thread:$0]  %s4, 16, %s55, [#allocation6]
    $region21: #{dqn_forward.1} parent=1 // pred_fallthru
      _
    // Predicated region
    $region22: #{dqn_forward.1} parent=1 // pred_check
      _
    $region23: #{dqn_forward.1} parent=1 // pred_check_branch
      %59 = sbr.rel (0) target = $region25
    $region24: #{dqn_forward.1} parent=1 // pred_region
      _
    $region25: #{dqn_forward.1} parent=1 // pred_fallthru
      _
    // Predicated region
    $region26: #{dqn_forward.1} parent=1 // pred_check
      _
    $region27: #{dqn_forward.1} parent=1 // pred_check_branch
      %61 = sbr.rel (0) target = $region29
    $region28: #{dqn_forward.1} parent=1 // pred_region
      %s63 = ssub.s32 16, 16
      %64 = vsyncadd [#allocation9], %s63
      %s66 = sshll.u32 [#allocation8], 4
      %s67 = int_to_ptr.vmem [resolvable:$true] %s66
      %69 = dma.hbm_to_vmem [thread:$0]  %s6, 16, %s67, [#allocation9]
    $region29: #{dqn_forward.1} parent=1 // pred_fallthru
      _
    // Predicated region
    $region30: #{dqn_forward.1} parent=1 // pred_check
      _
    $region31: #{dqn_forward.1} parent=1 // pred_check_branch
      %71 = sbr.rel (0) target = $region33
    $region32: #{dqn_forward.1} parent=1 // pred_region
      %s73 = ssub.s32 16, 16
      %74 = vsyncadd [#allocation9], %s73
      %s76 = sshll.u32 [#allocation10], 4
      %s77 = int_to_ptr.vmem [resolvable:$true] %s76
      %79 = dma.hbm_to_vmem [thread:$0]  %s7, 16, %s77, [#allocation9]
    $region33: #{dqn_forward.1} parent=1 // pred_fallthru
      _
    // Predicated region
    $region34: #{dqn_forward.1} parent=1 // pred_check
      _
    $region35: #{dqn_forward.1} parent=1 // pred_check_branch
      %81 = sbr.rel (0) target = $region37
    $region36: #{dqn_forward.1} parent=1 // pred_region
      %s83 = ssub.s32 16, 16
      %84 = vsyncadd [#allocation12], %s83
      %s86 = sshll.u32 [#allocation11], 4
      %s87 = int_to_ptr.vmem [resolvable:$true] %s86
      %89 = dma.hbm_to_vmem [thread:$0]  %s8, 16, %s87, [#allocation12]
    $region37: #{dqn_forward.1} parent=1 // pred_fallthru
      _
    // Predicated region
    $region38: #{dqn_forward.1} parent=1 // pred_check
      _
    $region39: #{dqn_forward.1} parent=1 // pred_check_branch
      %91 = sbr.rel (0) target = $region41
    $region40: #{dqn_forward.1} parent=1 // pred_region
      _
    $region41: #{dqn_forward.1} parent=1 // pred_fallthru
      _
    // Predicated region
    $region42: #{dqn_forward.1} parent=1 // pred_check
      _
    $region43: #{dqn_forward.1} parent=1 // pred_check_branch
      %93 = sbr.rel (0) target = $region45
    $region44: #{dqn_forward.1} parent=1 // pred_region
      %s95 = ssub.s32 16, 16
      %96 = vsyncadd [#allocation12], %s95
      %s98 = sshll.u32 [#allocation13], 4
      %s99 = int_to_ptr.vmem [resolvable:$true] %s98
      %101 = dma.hbm_to_vmem [thread:$0]  %s10, 16, %s99, [#allocation12]
    $region45: #{dqn_forward.1} parent=1 // pred_fallthru
      _
    // Predicated region
    $region46: #{dqn_forward.1} parent=1 // pred_check
      _
    $region47: #{dqn_forward.1} parent=1 // pred_check_branch
      %103 = sbr.rel (0) target = $region49
    $region48: #{dqn_forward.1} parent=1 // pred_region
      _
    $region49: #{dqn_forward.1} parent=1 // pred_fallthru
      _
    // Predicated region
    $region50: #{dqn_forward.1} parent=1 // pred_check
      _
    $region51: #{dqn_forward.1} parent=1 // pred_check_branch
      %105 = sbr.rel (0) target = $region53
    $region52: #{dqn_forward.1} parent=1 // pred_region
      %s107 = ssub.s32 16, 16
      %108 = vsyncadd [#allocation15], %s107
      %s110 = sshll.u32 [#allocation14], 4
      %s111 = int_to_ptr.vmem [resolvable:$true] %s110
      %113 = dma.hbm_to_vmem [thread:$0]  %s12, 16, %s111, [#allocation15]
    $region53: #{dqn_forward.1} parent=1 // pred_fallthru
      _
    // Predicated region
    $region54: #{dqn_forward.1} parent=1 // pred_check
      _
    $region55: #{dqn_forward.1} parent=1 // pred_check_branch
      %115 = sbr.rel (0) target = $region57
    $region56: #{dqn_forward.1} parent=1 // pred_region
      %116 = dma.done [#allocation3], 32
    $region57: #{dqn_forward.1} parent=1 // pred_fallthru
      _
    // Predicated region
    $region58: #{dqn_forward.1} parent=1 // pred_check
      _
    $region59: #{dqn_forward.1} parent=1 // pred_check_branch
      %118 = sbr.rel (0) target = $region61
    $region60: #{dqn_forward.1} parent=1 // pred_region
      %119 = dma.done [#allocation6], 16
    $region61: #{dqn_forward.1} parent=1 // pred_fallthru
      _
    // Predicated region
    $region62: #{dqn_forward.1} parent=1 // pred_check
      _
    $region63: #{dqn_forward.1} parent=1 // pred_check_branch
      %121 = sbr.rel (0) target = $region65
    $region64: #{dqn_forward.1} parent=1 // pred_region
      %122 = dma.done [#allocation6], 16
    $region65: #{dqn_forward.1} parent=1 // pred_fallthru
      _
    // Predicated region
    $region66: #{dqn_forward.1} parent=1 // pred_check
      _
    $region67: #{dqn_forward.1} parent=1 // pred_check_branch
      %124 = sbr.rel (0) target = $region69
    $region68: #{dqn_forward.1} parent=1 // pred_region
      %125 = dma.done [#allocation9], 16
    $region69: #{dqn_forward.1} parent=1 // pred_fallthru
      _
    // Predicated region
    $region70: #{dqn_forward.1} parent=1 // pred_check
      _
    $region71: #{dqn_forward.1} parent=1 // pred_check_branch
      %127 = sbr.rel (0) target = $region73
    $region72: #{dqn_forward.1} parent=1 // pred_region
      %128 = dma.done [#allocation9], 16
    $region73: #{dqn_forward.1} parent=1 // pred_fallthru
      _
    // Predicated region
    $region74: #{dqn_forward.1} parent=1 // pred_check
      _
    $region75: #{dqn_forward.1} parent=1 // pred_check_branch
      %130 = sbr.rel (0) target = $region77
    $region76: #{dqn_forward.1} parent=1 // pred_region
      %131 = dma.done [#allocation12], 16
    $region77: #{dqn_forward.1} parent=1 // pred_fallthru
      _
    // Predicated region
    $region78: #{dqn_forward.1} parent=1 // pred_check
      _
    $region79: #{dqn_forward.1} parent=1 // pred_check_branch
      %133 = sbr.rel (0) target = $region81
    $region80: #{dqn_forward.1} parent=1 // pred_region
      %134 = dma.done [#allocation12], 16
    $region81: #{dqn_forward.1} parent=1 // pred_fallthru
      _
    // Predicated region
    $region82: #{dqn_forward.1} parent=1 // pred_check
      _
    $region83: #{dqn_forward.1} parent=1 // pred_check_branch
      %136 = sbr.rel (0) target = $region85
    $region84: #{dqn_forward.1} parent=1 // pred_region
      %137 = dma.done [#allocation15], 16
    $region85: #{dqn_forward.1} parent=1 // pred_fallthru
      _
    %v139 = vld [vmem:[#allocation2] sm:$0x3]
    %v140 = vpack.c.bf16 %v139, %v139
    %v141 = vld [vmem:[%s1] sm:$0xf]
    %v142 = vld [vmem:[%s1 + $0x4] sm:$0xf]
    %v143 = vld [vmem:[%s2] sm:$0x1]
    %v145 = vlaneseq
    %v146 = vshrl.u32 %v145, 7
    %v147 = vsub.s32 0, %v146
    %v148 = vrot.slane %v143, %v147
    %v152 = vunpack.c.l.b16 %v141
    %v153 = vunpack.c.l.b16 %v142
    %v154 = vpack.c.b16 %v153, %v152
    %vm156 = vcmask 130048
    %v158 = vsel %vm156, %v140, 0
    %160 = vmatprep.subr.bf16.mxu0 0
    %161 = vmatpush1.bf16.msra.mxu0 %v154
    %162 = vmatprep.subr.bf16.mxu0 0
    %163 = vmatpush1.bf16.msra.mxu0 0
    %164 = vmatprep.subr.bf16.mxu0 0
    %165 = vmatpush1.bf16.msra.mxu0 0
    %166 = vmatprep.subr.bf16.mxu0 0
    %167 = vmatpush1.bf16.msra.mxu0 0
    %168 = vmatprep.subr.bf16.mxu0 0
    %169 = vmatpush1.bf16.msra.mxu0 0
    %170 = vmatprep.subr.bf16.mxu0 0
    %171 = vmatpush1.bf16.msra.mxu0 0
    %172 = vmatprep.subr.bf16.mxu0 0
    %173 = vmatpush1.bf16.msra.mxu0 0
    %174 = vmatprep.subr.bf16.mxu0 0
    %175 = vmatpush1.bf16.msra.mxu0 0
    %176 = vmatprep.subr.bf16.mxu0 0
    %177 = vmatpush1.bf16.msra.mxu0 0
    %178 = vmatprep.subr.bf16.mxu0 0
    %179 = vmatpush1.bf16.msra.mxu0 0
    %180 = vmatprep.subr.bf16.mxu0 0
    %181 = vmatpush1.bf16.msra.mxu0 0
    %182 = vmatprep.subr.bf16.mxu0 0
    %183 = vmatpush1.bf16.msra.mxu0 0
    %184 = vmatprep.subr.bf16.mxu0 0
    %185 = vmatpush1.bf16.msra.mxu0 0
    %186 = vmatprep.subr.bf16.mxu0 0
    %187 = vmatpush1.bf16.msra.mxu0 0
    %188 = vmatprep.subr.bf16.mxu0 0
    %189 = vmatpush1.bf16.msra.mxu0 0
    %190 = vmatprep.subr.bf16.mxu0 0
    %191 = vmatpush1.bf16.msra.mxu0 0
    %192 = vmatprep.mubr.bf16.mxu0 0
    %193 = vmatmul.mubr.bf16.gmra.mrb[0].mxu0 %v158
    %v194 = vpop.f32.mrb[0].mxu0
    %v195 = vadd.f32 %v148, %v194
    %v196 = vpop.f32.mrb[0].mxu0
    %v197 = vpop.f32.mrb[0].mxu0
    %v198 = vpop.f32.mrb[0].mxu0
    %199 = vdwg.mxu0
    %v200 = vld [vmem:[#allocation5] sm:$0x1]
    %v201 = vld [vmem:[#allocation7] sm:$0x1]
    %vm202 = vcmask 1041408
    %v203 = vsel %vm202, %v195, 0.0
    %204 = vadd.xlane.f32.xlu0 %v203
    %v205 = vpop.xlane.xlu0 %204
    %v206 = vrcp.pop 128.0
    %v207 = vmul.f32 %v205, %v206
    %v208 = vmul.f32 %v195, %v195
    %v209 = vsel %vm202, %v208, 0.0
    %210 = vadd.xlane.f32.xlu0 %v209
    %v211 = vpop.xlane.xlu0 %210
    %v212 = vmul.f32 %v211, %v206
    %v213 = vmul.f32 %v207, %v207
    %v214 = vsub.f32 %v212, %v213
    %v215 = vmax.f32 %v214, 0.0
    %v216 = vsub.f32 %v195, %v207
    %v217 = vadd.f32 %v215, 1e-05
    %v218 = vrsqrt.pop %v217
    %v219 = vmul.f32 %v216, %v218
    %v221 = vlaneseq
    %v222 = vshrl.u32 %v221, 7
    %v223 = vsub.s32 0, %v222
    %v224 = vrot.slane %v200, %v223
    %v226 = vmul.f32 %v219, %v224
    %v228 = vlaneseq
    %v229 = vshrl.u32 %v228, 7
    %v230 = vsub.s32 0, %v229
    %v231 = vrot.slane %v201, %v230
    %v233 = vadd.f32 %v226, %v231
    %v234 = vmax.f32 %v233, 0.0
    %v235 = vpack.c.bf16 %v234, %v234
    %v236 = vld [vmem:[%s5] sm:$0xf]
    %v237 = vld [vmem:[%s5 + $0x4] sm:$0xf]
    %v238 = vld [vmem:[%s5 + $0x8] sm:$0xf]
    %v239 = vld [vmem:[%s5 + $0xc] sm:$0xf]
    %v240 = vld [vmem:[%s5 + $0x10] sm:$0xf]
    %v241 = vld [vmem:[%s5 + $0x14] sm:$0xf]
    %v242 = vld [vmem:[%s5 + $0x18] sm:$0xf]
    %v243 = vld [vmem:[%s5 + $0x1c] sm:$0xf]
    %v244 = vld [vmem:[%s5 + $0x20] sm:$0xf]
    %v245 = vld [vmem:[%s5 + $0x24] sm:$0xf]
    %v246 = vld [vmem:[%s5 + $0x28] sm:$0xf]
    %v247 = vld [vmem:[%s5 + $0x2c] sm:$0xf]
    %v248 = vld [vmem:[%s5 + $0x30] sm:$0xf]
    %v249 = vld [vmem:[%s5 + $0x34] sm:$0xf]
    %v250 = vld [vmem:[%s5 + $0x38] sm:$0xf]
    %v251 = vld [vmem:[%s5 + $0x3c] sm:$0xf]
    %v252 = vld [vmem:[#allocation8] sm:$0x1]
    %v254 = vlaneseq
    %v255 = vshrl.u32 %v254, 7
    %v256 = vsub.s32 0, %v255
    %v257 = vrot.slane %v252, %v256
    %v275 = vunpack.c.l.b16 %v236
    %v276 = vunpack.c.l.b16 %v237
    %v277 = vunpack.c.l.b16 %v238
    %v278 = vunpack.c.l.b16 %v239
    %v279 = vunpack.c.l.b16 %v240
    %v280 = vunpack.c.l.b16 %v241
    %v281 = vunpack.c.l.b16 %v242
    %v282 = vunpack.c.l.b16 %v243
    %v283 = vunpack.c.l.b16 %v244
    %v284 = vunpack.c.l.b16 %v245
    %v285 = vunpack.c.l.b16 %v246
    %v286 = vunpack.c.l.b16 %v247
    %v287 = vunpack.c.l.b16 %v248
    %v288 = vunpack.c.l.b16 %v249
    %v289 = vunpack.c.l.b16 %v250
    %v290 = vunpack.c.l.b16 %v251
    %v291 = vpack.c.b16 %v276, %v275
    %v292 = vpack.c.b16 %v278, %v277
    %v293 = vpack.c.b16 %v280, %v279
    %v294 = vpack.c.b16 %v282, %v281
    %v295 = vpack.c.b16 %v284, %v283
    %v296 = vpack.c.b16 %v286, %v285
    %v297 = vpack.c.b16 %v288, %v287
    %v298 = vpack.c.b16 %v290, %v289
    %307 = vmatprep.subr.bf16.mxu0 0
    %308 = vmatpush1.bf16.msra.mxu0 %v291
    %309 = vmatprep.subr.bf16.mxu0 0
    %310 = vmatpush1.bf16.msra.mxu0 %v292
    %311 = vmatprep.subr.bf16.mxu0 0
    %312 = vmatpush1.bf16.msra.mxu0 %v293
    %313 = vmatprep.subr.bf16.mxu0 0
    %314 = vmatpush1.bf16.msra.mxu0 %v294
    %315 = vmatprep.subr.bf16.mxu0 0
    %316 = vmatpush1.bf16.msra.mxu0 %v295
    %317 = vmatprep.subr.bf16.mxu0 0
    %318 = vmatpush1.bf16.msra.mxu0 %v296
    %319 = vmatprep.subr.bf16.mxu0 0
    %320 = vmatpush1.bf16.msra.mxu0 %v297
    %321 = vmatprep.subr.bf16.mxu0 0
    %322 = vmatpush1.bf16.msra.mxu0 %v298
    %323 = vmatprep.subr.bf16.mxu0 0
    %324 = vmatpush1.bf16.msra.mxu0 0
    %325 = vmatprep.subr.bf16.mxu0 0
    %326 = vmatpush1.bf16.msra.mxu0 0
    %327 = vmatprep.subr.bf16.mxu0 0
    %328 = vmatpush1.bf16.msra.mxu0 0
    %329 = vmatprep.subr.bf16.mxu0 0
    %330 = vmatpush1.bf16.msra.mxu0 0
    %331 = vmatprep.subr.bf16.mxu0 0
    %332 = vmatpush1.bf16.msra.mxu0 0
    %333 = vmatprep.subr.bf16.mxu0 0
    %334 = vmatpush1.bf16.msra.mxu0 0
    %335 = vmatprep.subr.bf16.mxu0 0
    %336 = vmatpush1.bf16.msra.mxu0 0
    %337 = vmatprep.subr.bf16.mxu0 0
    %338 = vmatpush1.bf16.msra.mxu0 0
    %339 = vmatprep.mubr.bf16.mxu0 0
    %340 = vmatmul.mubr.bf16.gmra.mrb[0].mxu0 %v235
    %v341 = vpop.f32.mrb[0].mxu0
    %v342 = vadd.f32 %v257, %v341
    %v343 = vpop.f32.mrb[0].mxu0
    %v344 = vpop.f32.mrb[0].mxu0
    %v345 = vpop.f32.mrb[0].mxu0
    %346 = vdwg.mxu0
    %v347 = vld [vmem:[#allocation10] sm:$0x1]
    %v348 = vld [vmem:[#allocation11] sm:$0x1]
    %v349 = vsel %vm202, %v342, 0.0
    %350 = vadd.xlane.f32.xlu0 %v349
    %v351 = vpop.xlane.xlu0 %350
    %v352 = vmul.f32 %v351, %v206
    %v353 = vmul.f32 %v342, %v342
    %v354 = vsel %vm202, %v353, 0.0
    %355 = vadd.xlane.f32.xlu0 %v354
    %v356 = vpop.xlane.xlu0 %355
    %v357 = vmul.f32 %v356, %v206
    %v358 = vmul.f32 %v352, %v352
    %v359 = vsub.f32 %v357, %v358
    %v360 = vmax.f32 %v359, 0.0
    %v361 = vsub.f32 %v342, %v352
    %v362 = vadd.f32 %v360, 1e-05
    %v363 = vrsqrt.pop %v362
    %v364 = vmul.f32 %v361, %v363
    %v366 = vlaneseq
    %v367 = vshrl.u32 %v366, 7
    %v368 = vsub.s32 0, %v367
    %v369 = vrot.slane %v347, %v368
    %v371 = vmul.f32 %v364, %v369
    %v373 = vlaneseq
    %v374 = vshrl.u32 %v373, 7
    %v375 = vsub.s32 0, %v374
    %v376 = vrot.slane %v348, %v375
    %v378 = vadd.f32 %v371, %v376
    %v379 = vmax.f32 %v378, 0.0
    %v380 = vpack.c.bf16 %v379, %v379
    %v381 = vld [vmem:[%s9] sm:$0xf]
    %v382 = vld [vmem:[%s9 + $0x4] sm:$0xf]
    %v383 = vld [vmem:[%s9 + $0x8] sm:$0xf]
    %v384 = vld [vmem:[%s9 + $0xc] sm:$0xf]
    %v385 = vld [vmem:[%s9 + $0x10] sm:$0xf]
    %v386 = vld [vmem:[%s9 + $0x14] sm:$0xf]
    %v387 = vld [vmem:[%s9 + $0x18] sm:$0xf]
    %v388 = vld [vmem:[%s9 + $0x1c] sm:$0xf]
    %v389 = vld [vmem:[%s9 + $0x20] sm:$0xf]
    %v390 = vld [vmem:[%s9 + $0x24] sm:$0xf]
    %v391 = vld [vmem:[%s9 + $0x28] sm:$0xf]
    %v392 = vld [vmem:[%s9 + $0x2c] sm:$0xf]
    %v393 = vld [vmem:[%s9 + $0x30] sm:$0xf]
    %v394 = vld [vmem:[%s9 + $0x34] sm:$0xf]
    %v395 = vld [vmem:[%s9 + $0x38] sm:$0xf]
    %v396 = vld [vmem:[%s9 + $0x3c] sm:$0xf]
    %v397 = vld [vmem:[#allocation13] sm:$0x1]
    %v399 = vlaneseq
    %v400 = vshrl.u32 %v399, 7
    %v401 = vsub.s32 0, %v400
    %v402 = vrot.slane %v397, %v401
    %v420 = vunpack.c.l.b16 %v381
    %v421 = vunpack.c.l.b16 %v382
    %v422 = vunpack.c.l.b16 %v383
    %v423 = vunpack.c.l.b16 %v384
    %v424 = vunpack.c.l.b16 %v385
    %v425 = vunpack.c.l.b16 %v386
    %v426 = vunpack.c.l.b16 %v387
    %v427 = vunpack.c.l.b16 %v388
    %v428 = vunpack.c.l.b16 %v389
    %v429 = vunpack.c.l.b16 %v390
    %v430 = vunpack.c.l.b16 %v391
    %v431 = vunpack.c.l.b16 %v392
    %v432 = vunpack.c.l.b16 %v393
    %v433 = vunpack.c.l.b16 %v394
    %v434 = vunpack.c.l.b16 %v395
    %v435 = vunpack.c.l.b16 %v396
    %v436 = vpack.c.b16 %v421, %v420
    %v437 = vpack.c.b16 %v423, %v422
    %v438 = vpack.c.b16 %v425, %v424
    %v439 = vpack.c.b16 %v427, %v426
    %v440 = vpack.c.b16 %v429, %v428
    %v441 = vpack.c.b16 %v431, %v430
    %v442 = vpack.c.b16 %v433, %v432
    %v443 = vpack.c.b16 %v435, %v434
    %452 = vmatprep.subr.bf16.mxu0 0
    %453 = vmatpush1.bf16.msra.mxu0 %v436
    %454 = vmatprep.subr.bf16.mxu0 0
    %455 = vmatpush1.bf16.msra.mxu0 %v437
    %456 = vmatprep.subr.bf16.mxu0 0
    %457 = vmatpush1.bf16.msra.mxu0 %v438
    %458 = vmatprep.subr.bf16.mxu0 0
    %459 = vmatpush1.bf16.msra.mxu0 %v439
    %460 = vmatprep.subr.bf16.mxu0 0
    %461 = vmatpush1.bf16.msra.mxu0 %v440
    %462 = vmatprep.subr.bf16.mxu0 0
    %463 = vmatpush1.bf16.msra.mxu0 %v441
    %464 = vmatprep.subr.bf16.mxu0 0
    %465 = vmatpush1.bf16.msra.mxu0 %v442
    %466 = vmatprep.subr.bf16.mxu0 0
    %467 = vmatpush1.bf16.msra.mxu0 %v443
    %468 = vmatprep.subr.bf16.mxu0 0
    %469 = vmatpush1.bf16.msra.mxu0 0
    %470 = vmatprep.subr.bf16.mxu0 0
    %471 = vmatpush1.bf16.msra.mxu0 0
    %472 = vmatprep.subr.bf16.mxu0 0
    %473 = vmatpush1.bf16.msra.mxu0 0
    %474 = vmatprep.subr.bf16.mxu0 0
    %475 = vmatpush1.bf16.msra.mxu0 0
    %476 = vmatprep.subr.bf16.mxu0 0
    %477 = vmatpush1.bf16.msra.mxu0 0
    %478 = vmatprep.subr.bf16.mxu0 0
    %479 = vmatpush1.bf16.msra.mxu0 0
    %480 = vmatprep.subr.bf16.mxu0 0
    %481 = vmatpush1.bf16.msra.mxu0 0
    %482 = vmatprep.subr.bf16.mxu0 0
    %483 = vmatpush1.bf16.msra.mxu0 0
    %484 = vmatprep.mubr.bf16.mxu0 0
    %485 = vmatmul.mubr.bf16.gmra.mrb[0].mxu0 %v380
    %v486 = vpop.f32.mrb[0].mxu0
    %v487 = vadd.f32 %v402, %v486
    %v488 = vpop.f32.mrb[0].mxu0
    %v489 = vpop.f32.mrb[0].mxu0
    %v490 = vpop.f32.mrb[0].mxu0
    %491 = vdwg.mxu0
    %v492 = vmax.f32 %v487, 0.0
    %v493 = vpack.c.bf16 %v492, %v492
    %v494 = vld [vmem:[%s11] sm:$0xf]
    %v495 = vld [vmem:[%s11 + $0x4] sm:$0xf]
    %v496 = vld [vmem:[%s11 + $0x8] sm:$0xf]
    %v497 = vld [vmem:[%s11 + $0xc] sm:$0xf]
    %v498 = vld [vmem:[%s11 + $0x10] sm:$0xf]
    %v499 = vld [vmem:[%s11 + $0x14] sm:$0xf]
    %v500 = vld [vmem:[%s11 + $0x18] sm:$0xf]
    %v501 = vld [vmem:[%s11 + $0x1c] sm:$0xf]
    %v502 = vld [vmem:[#allocation14] sm:$0x1]
    %v504 = vlaneseq
    %v505 = vshrl.u32 %v504, 7
    %v506 = vsub.s32 0, %v505
    %v507 = vrot.slane %v502, %v506
    %v517 = vunpack.c.l.b16 %v494
    %v518 = vunpack.c.l.b16 %v495
    %v519 = vunpack.c.l.b16 %v496
    %v520 = vunpack.c.l.b16 %v497
    %v521 = vunpack.c.l.b16 %v498
    %v522 = vunpack.c.l.b16 %v499
    %v523 = vunpack.c.l.b16 %v500
    %v524 = vunpack.c.l.b16 %v501
    %v525 = vpack.c.b16 %v518, %v517
    %v526 = vpack.c.b16 %v520, %v519
    %v527 = vpack.c.b16 %v522, %v521
    %v528 = vpack.c.b16 %v524, %v523
    %vm533 = vcmask 523264
    %v535 = vsel %vm533, %v493, 0
    %537 = vmatprep.subr.bf16.mxu0 0
    %538 = vmatpush1.bf16.msra.mxu0 %v525
    %539 = vmatprep.subr.bf16.mxu0 0
    %540 = vmatpush1.bf16.msra.mxu0 %v526
    %541 = vmatprep.subr.bf16.mxu0 0
    %542 = vmatpush1.bf16.msra.mxu0 %v527
    %543 = vmatprep.subr.bf16.mxu0 0
    %544 = vmatpush1.bf16.msra.mxu0 %v528
    %545 = vmatprep.subr.bf16.mxu0 0
    %546 = vmatpush1.bf16.msra.mxu0 0
    %547 = vmatprep.subr.bf16.mxu0 0
    %548 = vmatpush1.bf16.msra.mxu0 0
    %549 = vmatprep.subr.bf16.mxu0 0
    %550 = vmatpush1.bf16.msra.mxu0 0
    %551 = vmatprep.subr.bf16.mxu0 0
    %552 = vmatpush1.bf16.msra.mxu0 0
    %553 = vmatprep.subr.bf16.mxu0 0
    %554 = vmatpush1.bf16.msra.mxu0 0
    %555 = vmatprep.subr.bf16.mxu0 0
    %556 = vmatpush1.bf16.msra.mxu0 0
    %557 = vmatprep.subr.bf16.mxu0 0
    %558 = vmatpush1.bf16.msra.mxu0 0
    %559 = vmatprep.subr.bf16.mxu0 0
    %560 = vmatpush1.bf16.msra.mxu0 0
    %561 = vmatprep.subr.bf16.mxu0 0
    %562 = vmatpush1.bf16.msra.mxu0 0
    %563 = vmatprep.subr.bf16.mxu0 0
    %564 = vmatpush1.bf16.msra.mxu0 0
    %565 = vmatprep.subr.bf16.mxu0 0
    %566 = vmatpush1.bf16.msra.mxu0 0
    %567 = vmatprep.subr.bf16.mxu0 0
    %568 = vmatpush1.bf16.msra.mxu0 0
    %569 = vmatprep.mubr.bf16.mxu0 0
    %570 = vmatmul.mubr.bf16.gmra.mrb[0].mxu0 %v535
    %v571 = vpop.f32.mrb[0].mxu0
    %v572 = vadd.f32 %v507, %v571
    %v573 = vpop.f32.mrb[0].mxu0
    %v574 = vpop.f32.mrb[0].mxu0
    %v575 = vpop.f32.mrb[0].mxu0
    %576 = vdwg.mxu0
    %577 = vst [vmem:[#allocation16] sm:$0x3] %v572
    // Predicated region
    $region86: #{dqn_forward.1} parent=1 // pred_check
      _
    $region87: #{dqn_forward.1} parent=1 // pred_check_branch
      %579 = sbr.rel (0) target = $region89
    $region88: #{dqn_forward.1} parent=1 // pred_region
      %s581 = ssub.s32 32, 32
      %582 = vsyncadd [#allocation4], %s581
      %s584 = sshll.u32 [#allocation16], 4
      %s585 = int_to_ptr.vmem [resolvable:$true] %s584
      %587 = dma.vmem_to_hbm [thread:$0]  %s585, 32, %s13, [#allocation4]
    $region89: #{dqn_forward.1} parent=1 // pred_fallthru
      _
    // Predicated region
    $region90: #{dqn_forward.1} parent=1 // pred_check
      _
    $region91: #{dqn_forward.1} parent=1 // pred_check_branch
      %589 = sbr.rel (0) target = $region93
    $region92: #{dqn_forward.1} parent=1 // pred_region
      %590 = dma.done [#allocation4], 32
    $region93: #{dqn_forward.1} parent=1 // pred_fallthru
      _
    %591 = vsyncpa [#allocation3], 1
    %592 = vsyncpa [#allocation6], 1
    %593 = vsyncpa [#allocation9], 1
    %594 = vsyncpa [#allocation12], 1
    %595 = vsyncpa [#allocation15], 1
    %596 = vsyncpa [#allocation4], 1

</llo_original>
